<compile_context>
chip_gen: v7x
topology: tpu7x:2x2x1
jax: 0.10.0
libtpu: 0.0.40
codegen_flags: <defaults>
</compile_context>

<pallas_src>
import functools

import jax
import jax.numpy as jnp
from jax.experimental import pallas as pl
from jax.experimental.pallas import tpu as pltpu


def _round_up(x, m):
    return ((x + m - 1) // m) * m


def _pow_gamma(z, gamma):
    """z ** gamma for z >= 0 without the exp/log EUP pair for common gammas."""
    if gamma == 0.0:
        return jnp.ones_like(z)
    if gamma == 0.5:
        return jnp.sqrt(z)
    if gamma == 1.0:
        return z
    if gamma == 1.5:
        return z * jnp.sqrt(z)
    if gamma == 2.0:
        return z * z
    # Generic fallback via exp/log (both supported by Mosaic); guard z == 0.
    safe = jnp.maximum(z, jnp.float32(1e-38))
    return jnp.where(z > 0.0, jnp.exp(gamma * jnp.log(safe)), 0.0)


def _focal_loss_kernel(pred_ref, label_ref, out_ref, *, gamma, alpha):
    x = pred_ref[...].astype(jnp.float32)
    y = label_ref[...].astype(jnp.float32)

    # One shared EUP exp: t = exp(-|x|) feeds both the stable BCE and sigmoid.
    t = jnp.exp(-jnp.abs(x))
    bce = jnp.maximum(x, 0.0) - x * y + jnp.log1p(t)

    one_plus_t = 1.0 + t
    # NOTE: approx=True (EUP vrcp) is a bit faster but adds visible error to
    # sigmoid; keep the exact reciprocal for numerical parity with PyTorch.
    inv = pl.reciprocal(one_plus_t, approx=False)
    p = jnp.where(x >= 0.0, inv, t * inv)            # sigmoid(x)

    # 1 - p_t == y*(1-p) + (1-y)*p == y + p*(1 - 2y)
    z = y + p * (1.0 - 2.0 * y)
    loss = bce * _pow_gamma(z, gamma)

    if alpha > 0:
        # label*alpha + (1-label)*(1-alpha) == (1-alpha) + label*(2*alpha - 1)
        loss = loss * ((1.0 - alpha) + y * (2.0 * alpha - 1.0))

    # Fold the row tile down to an (8, col_tile) lane-dense partial with pure
    # VPU adds (the reshape only splits the leading sublane axis -> free).
    rt, ct = loss.shape
    out_ref[...] = jnp.sum(loss.reshape(rt // 8, 8, ct), axis=0)


def _choose_tiles(n, c):
    """Pick lane/sublane-aligned tiles with a ~1 MiB-per-input-tile budget."""
    c_pad = _round_up(c, 128)

    # Column tile: largest multiple-of-128 divisor of c_pad, capped at 2048.
    max_col = 2048
    col = c_pad
    if col > max_col:
        k = c_pad // 128
        best = 1
        for d in range(1, k + 1):
            if k % d == 0 and 128 * d <= max_col:
                best = d
        col = 128 * best

    budget_elems = (1024 * 1024) // 4               # ~1 MiB of f32 per input tile
    row = max(8, (budget_elems // col) // 8 * 8)
    row = min(row, 2048)
    row = min(row, _round_up(n, 8))                 # don't exceed (padded) N
    return row, col, c_pad


def focal_loss(pred, label, gamma=1.5, alpha=0.25):
    """pred, label: (N, C) float arrays.  Returns scalar f32 == loss.mean(1).sum()."""
    assert pred.shape == label.shape and pred.ndim == 2
    n, c = pred.shape
    row_tile, col_tile, c_pad = _choose_tiles(n, c)
    n_pad = _round_up(max(n, row_tile), row_tile)

    if (n_pad, c_pad) != (n, c):
        # Sentinel padding: logit -30 with label 0 -> loss ~1e-33 per element.
        pred = jnp.pad(pred, ((0, n_pad - n), (0, c_pad - c)),
                       constant_values=-30.0)
        label = jnp.pad(label, ((0, n_pad - n), (0, c_pad - c)),
                        constant_values=0.0)

    grid = (n_pad // row_tile, c_pad // col_tile)
    kernel = functools.partial(_focal_loss_kernel,
                               gamma=float(gamma), alpha=float(alpha))

    partials = pl.pallas_call(
        kernel,
        out_shape=jax.ShapeDtypeStruct((grid[0] * 8, c_pad), jnp.float32),
        grid_spec=pltpu.PrefetchScalarGridSpec(
            num_scalar_prefetch=0,
            grid=grid,
            in_specs=[
                pl.BlockSpec((row_tile, col_tile), lambda i, j: (i, j)),
                pl.BlockSpec((row_tile, col_tile), lambda i, j: (i, j)),
            ],
            out_specs=pl.BlockSpec((8, col_tile), lambda i, j: (i, j)),
        ),
        compiler_params=pltpu.CompilerParams(
            # Each (i, j) writes its own lane-dense output block -> both axes
            # are truly parallel (lets v7x split row tiles across its 2 TCs).
            dimension_semantics=("parallel", "parallel"),
            vmem_limit_bytes=32 * 1024 * 1024,
        ),
    )(pred, label)

    # mean over the class dim (original C!) then sum over rows == sum(all) / C.
    return jnp.sum(partials) * (1.0 / c)


def _focal_loss_ref(pred, label, gamma=1.5, alpha=0.25):
    """Pure-JAX reference mirroring the PyTorch module."""
    bce = jnp.maximum(pred, 0.0) - pred * label + jnp.log1p(jnp.exp(-jnp.abs(pred)))
    p = jax.nn.sigmoid(pred)
    p_t = label * p + (1 - label) * (1 - p)
    loss = bce * jnp.power(1.0 - p_t, gamma)
    if alpha > 0:
        loss = loss * (label * alpha + (1 - label) * (1 - alpha))
    return loss.mean(axis=1).sum()


if __name__ == "__main__":
    key = jax.random.PRNGKey(0)
    k1, k2, k3, k4 = jax.random.split(key, 4)

    # (batch*anchors, classes): one non-aligned shape (exercises the padding
    # path) and one lane-aligned shape.
    cases = (((20, 80), k1, k2), ((16, 128), k3, k4))
    for (N, C), kp, kl in cases:
        pred = jax.random.normal(kp, (N, C), dtype=jnp.float32) * 2.0
        # binary targets (soft targets are also valid for BCEWithLogits)
        label = (jax.random.uniform(kl, (N, C)) > 0.7).astype(jnp.float32)

        out = jax.block_until_ready(focal_loss(pred, label))
        ref = _focal_loss_ref(pred, label)
        assert jnp.allclose(out, ref, rtol=1e-4, atol=1e-4), (N, C, out, ref)

    print("KERNEL_OK")
</pallas_src>

<mosaic_0001>
module attributes {stable_mosaic.version = 11 : i64} {
  func.func @_focal_loss_kernel(%arg0: i32, %arg1: i32, %arg2: memref<24x128xf32, #tpu.memory_space<vmem>>, %arg3: memref<24x128xf32, #tpu.memory_space<vmem>>, %arg4: memref<8x128xf32, #tpu.memory_space<vmem>>) attributes {dimension_semantics = [#tpu.dimension_semantics<parallel>, #tpu.dimension_semantics<parallel>], iteration_bounds = array<i64: 1, 1>, scalar_prefetch = 0 : i64, scratch_operands = 0 : i64, tpu.core_type = #tpu.core_type<tc>, window_params = [{transform_indices = @transform_0, window_bounds = array<i64: 24, 128>}, {transform_indices = @transform_1, window_bounds = array<i64: 24, 128>}, {transform_indices = @transform_2, window_bounds = array<i64: 8, 128>}]} {
    %c0 = arith.constant 0 : index
    %c0_0 = arith.constant 0 : index
    %0 = vector.load %arg2[%c0, %c0_0] : memref<24x128xf32, #tpu.memory_space<vmem>>, vector<24x128xf32>
    %c0_1 = arith.constant 0 : index
    %c0_2 = arith.constant 0 : index
    %1 = vector.load %arg3[%c0_1, %c0_2] : memref<24x128xf32, #tpu.memory_space<vmem>>, vector<24x128xf32>
    %2 = math.absf %0 : vector<24x128xf32>
    %cst = arith.constant 0.000000e+00 : f32
    %3 = vector.broadcast %cst : f32 to vector<24x128xf32>
    %4 = arith.subf %3, %2 : vector<24x128xf32>
    %5 = math.exp %4 : vector<24x128xf32>
    %cst_3 = arith.constant 0.000000e+00 : f32
    %6 = vector.broadcast %cst_3 : f32 to vector<24x128xf32>
    %7 = arith.maximumf %0, %6 : vector<24x128xf32>
    %8 = arith.mulf %0, %1 : vector<24x128xf32>
    %9 = arith.subf %7, %8 : vector<24x128xf32>
    %10 = math.log1p %5 : vector<24x128xf32>
    %11 = arith.addf %9, %10 : vector<24x128xf32>
    %cst_4 = arith.constant 1.000000e+00 : f32
    %12 = vector.broadcast %cst_4 : f32 to vector<24x128xf32>
    %13 = arith.addf %12, %5 : vector<24x128xf32>
    %14 = tpu.reciprocal %13 : vector<24x128xf32> -> vector<24x128xf32>
    %cst_5 = arith.constant 0.000000e+00 : f32
    %15 = vector.broadcast %cst_5 : f32 to vector<24x128xf32>
    %16 = arith.cmpf oge, %0, %15 : vector<24x128xf32>
    %17 = arith.mulf %5, %14 : vector<24x128xf32>
    %18 = arith.select %16, %14, %17 : vector<24x128xi1>, vector<24x128xf32>
    %cst_6 = arith.constant 2.000000e+00 : f32
    %19 = vector.broadcast %cst_6 : f32 to vector<24x128xf32>
    %20 = arith.mulf %19, %1 : vector<24x128xf32>
    %cst_7 = arith.constant 1.000000e+00 : f32
    %21 = vector.broadcast %cst_7 : f32 to vector<24x128xf32>
    %22 = arith.subf %21, %20 : vector<24x128xf32>
    %23 = arith.mulf %18, %22 : vector<24x128xf32>
    %24 = arith.addf %1, %23 : vector<24x128xf32>
    %25 = math.sqrt %24 : vector<24x128xf32>
    %26 = arith.mulf %24, %25 : vector<24x128xf32>
    %27 = arith.mulf %11, %26 : vector<24x128xf32>
    %cst_8 = arith.constant -5.000000e-01 : f32
    %28 = vector.broadcast %cst_8 : f32 to vector<24x128xf32>
    %29 = arith.mulf %1, %28 : vector<24x128xf32>
    %cst_9 = arith.constant 7.500000e-01 : f32
    %30 = vector.broadcast %cst_9 : f32 to vector<24x128xf32>
    %31 = arith.addf %30, %29 : vector<24x128xf32>
    %32 = arith.mulf %27, %31 : vector<24x128xf32>
    %33 = vector.shape_cast %32 : vector<24x128xf32> to vector<3x8x128xf32>
    %cst_10 = arith.constant dense<0.000000e+00> : vector<8x128xf32>
    %34 = vector.multi_reduction <add>, %33, %cst_10 [0] : vector<3x8x128xf32> to vector<8x128xf32>
    %c0_11 = arith.constant 0 : index
    %c0_12 = arith.constant 0 : index
    %35 = vector.load %arg4[%c0_11, %c0_12] : memref<8x128xf32, #tpu.memory_space<vmem>>, vector<8x128xf32>
    tpu.vector_store %arg4[%c0_11, %c0_12], %34 {strides = array<i32>} : memref<8x128xf32, #tpu.memory_space<vmem>>, vector<8x128xf32>,
    return
  }
  func.func @transform_0(%arg0: i32, %arg1: i32) -> (i32, i32) {
    %c0_i32 = arith.constant 0 : i32
    return %arg0, %arg1 : i32, i32
  }
  func.func @transform_1(%arg0: i32, %arg1: i32) -> (i32, i32) {
    %c0_i32 = arith.constant 0 : i32
    return %arg0, %arg1 : i32, i32
  }
  func.func @transform_2(%arg0: i32, %arg1: i32) -> (i32, i32) {
    %c0_i32 = arith.constant 0 : i32
    return %arg0, %arg1 : i32, i32
  }
}

</mosaic_0001>

<llo_original>
// kernel: tpu_custom_call.1
$region0: #{tpu_custom_call.1}
  #allocation0 [shape = 'u32[]', space=smem, size = 0x4, offset = 0x4, fixed_abs, tag = 'smem constant byte address 0x4 - core index']
  #allocation1 [shape = 'u32[144,128]{1,0:T(1,128)}', space=vmem, size = 0x12000, scoped, tag = 'internal scratch']
  %s0 = inlined_call_operand.hbm [shape: f32[24,128], index: 0, kind: input, shape index: {}]
  %s1 = inlined_call_operand.hbm [shape: f32[24,128], index: 1, kind: input, shape index: {}]
  %s2 = inlined_call_operand.hbm [shape: f32[8,128], index: 2, kind: output, shape index: {}]
  %s3 = sld [smem:[#allocation0]]
  $region26: #{tpu_custom_call.1} parent=0
    _
  %s5 = ssub.s32 1, %s3
  %s6 = scalar_select 0, %s5, %s3
  $region1: #{tpu_custom_call.1} parent=0
    #allocation2 [shape = 'u8[12288]{0}', space=vmem, size = 0x3000, scoped, tag = 'input window, operand 0, single buffered']
    #allocation3 [shape = 's32[1]{0}', space=sflag, size = 0x4, scoped, tag = 'scoped memory for tpu_custom_call.1']
    #allocation4 [shape = 's32[1]{0}', space=sflag, size = 0x4, scoped, tag = 'scoped memory for tpu_custom_call.1']
    #allocation5 [shape = 'u8[12288]{0}', space=vmem, size = 0x3000, scoped, tag = 'input window, operand 1, single buffered']
    #allocation6 [shape = 's32[1]{0}', space=sflag, size = 0x4, scoped, tag = 'scoped memory for tpu_custom_call.1']
    #allocation7 [shape = 'u8[4096]{0}', space=vmem, size = 0x1000, scoped, tag = 'output window, operand 0, single buffered']
    %7 = vsyncpa [#allocation3], 0
    %8 = vsyncpa [#allocation6], 0
    %9 = vsyncpa [#allocation4], 0
    // Predicated region
    $region2: #{tpu_custom_call.1} parent=1 // pred_check
      _
    $region3: #{tpu_custom_call.1} parent=1 // pred_check_branch
      %11 = sbr.rel (0) target = $region5
    $region4: #{tpu_custom_call.1} parent=1 // pred_region
      %s13 = ssub.s32 384, 384
      %14 = vsyncadd [#allocation3], %s13
      %s15 = sshll.u32 [#allocation2], 4
      %s16 = int_to_ptr.vmem [resolvable:$true] %s15
      %21 = dma.hbm_to_vmem [thread:$0]  %s0, 384, %s16, [#allocation3], 128, 128, 8
    $region5: #{tpu_custom_call.1} parent=1 // pred_fallthru
      _
    // Predicated region
    $region6: #{tpu_custom_call.1} parent=1 // pred_check
      _
    $region7: #{tpu_custom_call.1} parent=1 // pred_check_branch
      %23 = sbr.rel (0) target = $region9
    $region8: #{tpu_custom_call.1} parent=1 // pred_region
      %s25 = ssub.s32 384, 384
      %26 = vsyncadd [#allocation6], %s25
      %s27 = sshll.u32 [#allocation5], 4
      %s28 = int_to_ptr.vmem [resolvable:$true] %s27
      %33 = dma.hbm_to_vmem [thread:$0]  %s1, 384, %s28, [#allocation6], 128, 128, 8
    $region9: #{tpu_custom_call.1} parent=1 // pred_fallthru
      _
    // Predicated region
    $region10: #{tpu_custom_call.1} parent=1 // pred_check
      _
    $region11: #{tpu_custom_call.1} parent=1 // pred_check_branch
      %35 = sbr.rel (0) target = $region13
    $region12: #{tpu_custom_call.1} parent=1 // pred_region
      %36 = dma.done [#allocation3], 384
    $region13: #{tpu_custom_call.1} parent=1 // pred_fallthru
      _
    // Predicated region
    $region14: #{tpu_custom_call.1} parent=1 // pred_check
      _
    $region15: #{tpu_custom_call.1} parent=1 // pred_check_branch
      %38 = sbr.rel (0) target = $region17
    $region16: #{tpu_custom_call.1} parent=1 // pred_region
      %39 = dma.done [#allocation6], 384
    $region17: #{tpu_custom_call.1} parent=1 // pred_fallthru
      _
    %v40 = vld [vmem:[#allocation2] sm:$0xff]
    %v41 = vld [vmem:[#allocation2 + $0x8] sm:$0xff]
    %v42 = vld [vmem:[#allocation2 + $0x10] sm:$0xff]
    %v43 = vld [vmem:[#allocation5] sm:$0xff]
    %v44 = vld [vmem:[#allocation5 + $0x8] sm:$0xff]
    %v45 = vld [vmem:[#allocation5 + $0x10] sm:$0xff]
    %v46 = vand.u32 2147483647, %v40
    %v47 = vand.u32 2147483647, %v41
    %v48 = vand.u32 2147483647, %v42
    %v49 = vsub.f32 0.0, %v46
    %v50 = vsub.f32 0.0, %v47
    %v51 = vsub.f32 0.0, %v48
    %v52 = vmul.f32 %v49, 1.442695
    %v53 = vpow.pop %v52
    %v54 = vmul.f32 %v50, 1.442695
    %v55 = vpow.pop %v54
    %v56 = vmul.f32 %v51, 1.442695
    %v57 = vpow.pop %v56
    %v58 = vmax.f32 %v40, 0.0
    %v59 = vmax.f32 %v41, 0.0
    %v60 = vmax.f32 %v42, 0.0
    %v61 = vmul.f32 %v40, %v43
    %v62 = vmul.f32 %v41, %v44
    %v63 = vmul.f32 %v42, %v45
    %v64 = vsub.f32 %v58, %v61
    %v65 = vsub.f32 %v59, %v62
    %v66 = vsub.f32 %v60, %v63
    %v67 = vadd.f32 %v53, 1.0
    %v68 = vlog2.pop %v67
    %v69 = vmul.f32 %v68, 0.6931472
    %v70 = vmul.f32 -0.5, %v53
    %v71 = vadd.f32 %v70, 1.0
    %v72 = vmul.f32 %v71, %v53
    %v73 = vand.u32 2147483647, %v53
    %vm74 = vcmp.lt.f32.partialorder %v73, 0.0004427343
    %v75 = vsel %vm74, %v72, %v69
    %v76 = vadd.f32 %v55, 1.0
    %v77 = vlog2.pop %v76
    %v78 = vmul.f32 %v77, 0.6931472
    %v79 = vmul.f32 -0.5, %v55
    %v80 = vadd.f32 %v79, 1.0
    %v81 = vmul.f32 %v80, %v55
    %v82 = vand.u32 2147483647, %v55
    %vm83 = vcmp.lt.f32.partialorder %v82, 0.0004427343
    %v84 = vsel %vm83, %v81, %v78
    %v85 = vadd.f32 %v57, 1.0
    %v86 = vlog2.pop %v85
    %v87 = vmul.f32 %v86, 0.6931472
    %v88 = vmul.f32 -0.5, %v57
    %v89 = vadd.f32 %v88, 1.0
    %v90 = vmul.f32 %v89, %v57
    %v91 = vand.u32 2147483647, %v57
    %vm92 = vcmp.lt.f32.partialorder %v91, 0.0004427343
    %v93 = vsel %vm92, %v90, %v87
    %v94 = vadd.f32 %v64, %v75
    %v95 = vadd.f32 %v65, %v84
    %v96 = vadd.f32 %v66, %v93
    %v97 = vadd.f32 %v53, 1.0
    %v98 = vadd.f32 %v55, 1.0
    %v99 = vadd.f32 %v57, 1.0
    %v100 = vrcp.pop %v97
    %v101 = vrcp.pop %v98
    %v102 = vrcp.pop %v99
    %vm103 = vcmp.ge.f32.partialorder %v40, 0.0
    %vm104 = vcmp.ge.f32.partialorder %v41, 0.0
    %vm105 = vcmp.ge.f32.partialorder %v42, 0.0
    %v106 = vmul.f32 %v53, %v100
    %v107 = vmul.f32 %v55, %v101
    %v108 = vmul.f32 %v57, %v102
    %v109 = vsel %vm103, %v100, %v106
    %v110 = vsel %vm104, %v101, %v107
    %v111 = vsel %vm105, %v102, %v108
    %v112 = vmul.f32 %v43, 2.0
    %v113 = vmul.f32 %v44, 2.0
    %v114 = vmul.f32 %v45, 2.0
    %v115 = vsub.f32 1.0, %v112
    %v116 = vsub.f32 1.0, %v113
    %v117 = vsub.f32 1.0, %v114
    %v118 = vmul.f32 %v109, %v115
    %v119 = vmul.f32 %v110, %v116
    %v120 = vmul.f32 %v111, %v117
    %v121 = vadd.f32 %v43, %v118
    %v122 = vadd.f32 %v44, %v119
    %v123 = vadd.f32 %v45, %v120
    %v124 = vrsqrt.pop %v121
    %v125 = vmul.f32 %v121, %v124
    %vm126 = vcmp.eq.f32.partialorder %v121, inf
    %v127 = vsel %vm126, %v121, %v125
    %vm128 = vcmp.eq.f32.partialorder %v121, 0.0
    %v129 = vand.u32 %v121, 2147483648
    %v130 = vsel %vm128, %v129, %v127
    %v131 = vrsqrt.pop %v122
    %v132 = vmul.f32 %v122, %v131
    %vm133 = vcmp.eq.f32.partialorder %v122, inf
    %v134 = vsel %vm133, %v122, %v132
    %vm135 = vcmp.eq.f32.partialorder %v122, 0.0
    %v136 = vand.u32 %v122, 2147483648
    %v137 = vsel %vm135, %v136, %v134
    %v138 = vrsqrt.pop %v123
    %v139 = vmul.f32 %v123, %v138
    %vm140 = vcmp.eq.f32.partialorder %v123, inf
    %v141 = vsel %vm140, %v123, %v139
    %vm142 = vcmp.eq.f32.partialorder %v123, 0.0
    %v143 = vand.u32 %v123, 2147483648
    %v144 = vsel %vm142, %v143, %v141
    %v145 = vmul.f32 %v121, %v130
    %v146 = vmul.f32 %v122, %v137
    %v147 = vmul.f32 %v123, %v144
    %v148 = vmul.f32 %v94, %v145
    %v149 = vmul.f32 %v95, %v146
    %v150 = vmul.f32 %v96, %v147
    %v151 = vmul.f32 %v43, -0.5
    %v152 = vmul.f32 %v44, -0.5
    %v153 = vmul.f32 %v45, -0.5
    %v154 = vadd.f32 %v151, 0.75
    %v155 = vadd.f32 %v152, 0.75
    %v156 = vadd.f32 %v153, 0.75
    %v157 = vmul.f32 %v148, %v154
    %v158 = vmul.f32 %v149, %v155
    %v159 = vmul.f32 %v150, %v156
    %v160 = vadd.f32 %v157, %v158
    %v161 = vadd.f32 %v160, %v159
    %162 = vst [vmem:[#allocation7] sm:$0xff] %v161
    // Predicated region
    $region18: #{tpu_custom_call.1} parent=1 // pred_check
      _
    $region19: #{tpu_custom_call.1} parent=1 // pred_check_branch
      %164 = sbr.rel (0) target = $region21
    $region20: #{tpu_custom_call.1} parent=1 // pred_region
      %s166 = ssub.s32 128, 128
      %167 = vsyncadd [#allocation4], %s166
      %s169 = sshll.u32 [#allocation7], 4
      %s170 = int_to_ptr.vmem [resolvable:$true] %s169
      %172 = dma.vmem_to_hbm [thread:$0]  %s170, 128, %s2, [#allocation4]
    $region21: #{tpu_custom_call.1} parent=1 // pred_fallthru
      _
    // Predicated region
    $region22: #{tpu_custom_call.1} parent=1 // pred_check
      _
    $region23: #{tpu_custom_call.1} parent=1 // pred_check_branch
      %174 = sbr.rel (0) target = $region25
    $region24: #{tpu_custom_call.1} parent=1 // pred_region
      %175 = dma.done [#allocation4], 128
    $region25: #{tpu_custom_call.1} parent=1 // pred_fallthru
      _
    %176 = vsyncpa [#allocation3], 1
    %177 = vsyncpa [#allocation6], 1
    %178 = vsyncpa [#allocation4], 1

</llo_original>
